<compile_context>
chip_gen: v5e
topology: v5e:2x2
jax: 0.10.0
libtpu: 0.0.40
codegen_flags: <defaults>
</compile_context>

<pallas_src>
import functools

import jax
import jax.numpy as jnp
import numpy as np
from jax.experimental import pallas as pl
from jax.experimental.pallas import tpu as pltpu


def _shifted_idft_matrix(n: int) -> np.ndarray:
    """Complex n x n IDFT matrix with ifftshift folded into its columns."""
    u = np.arange(n)[:, None]
    h = np.arange(n)[None, :]
    f = np.exp(2j * np.pi * u * h / n) / n          # standard IDFT matrix
    return np.roll(f, n // 2, axis=1)               # fold ifftshift into the columns


@functools.lru_cache(maxsize=8)
def _ifftshift_ifft2_block_operator(h: int, w: int) -> np.ndarray:
    """Real (2*h*w, 2*h*w) operator: [z_re | z_im] = [x_re | x_im] @ K_blk, where
    z = ifft2(ifftshift(x)) for a row-major flattened (h, w) complex slice."""
    a_h = _shifted_idft_matrix(h)                   # (h, h) complex
    a_w = _shifted_idft_matrix(w)                   # (w, w) complex
    k = np.kron(a_h, a_w).T                         # z_flat = x_flat @ k
    kr = np.real(k).astype(np.float32)
    ki = np.imag(k).astype(np.float32)
    return np.block([[kr, ki], [-ki, kr]]).astype(np.float32)


def _dc_kernel(mask_ref, xrr_ref, xri_ref, xur_ref, xui_ref, kmat_ref, out_ref):
    # blocks: mask / xrr / xri / xur / xui -> (TN, HW); kmat -> (2HW, 2HW); out -> (TN, HW)
    hw = out_ref.shape[-1]
    keep = 1.0 - mask_ref[...]
    y_re = keep * xrr_ref[...] + xur_ref[...]       # data consistency, real part
    y_im = keep * xri_ref[...] + xui_ref[...]       # data consistency, imag part
    y = jnp.concatenate([y_re, y_im], axis=-1)      # (TN, 2*HW), 128-lane-aligned join

    # fused ifftshift + ifft2: one MXU matmul for the whole TN batch (f32 for accuracy)
    z = jnp.dot(y, kmat_ref[...], preferred_element_type=jnp.float32)

    zr = z[:, :hw]
    zi = z[:, hw:]
    out_ref[...] = jnp.sqrt(zr * zr + zi * zi)      # |ifft2(...)|, lane-dense store


def _vmem_capacity_bytes() -> int:
    try:
        return int(pltpu.get_tpu_info().vmem_capacity_bytes)
    except Exception:
        return 64 << 20                             # conservative (v7x per-core VMEM)


def _choose_tile(n: int, hw: int, vmem_cap: int, kmat_bytes: int) -> int:
    """Slices (rows) per grid step: multiple of 8, target 128-512 for MXU M dim,
    sized from a generation-aware VMEM budget (kmat + I/O double-buffers + temporaries)."""
    if n <= 8:
        return n
    # per-slice VMEM bytes: 5 f32 inputs + 1 f32 output (double-buffered) + y/z temporaries
    per_slice = 2 * 6 * hw * 4 + 2 * (2 * hw) * 4
    budget = (vmem_cap * 3) // 4 - kmat_bytes - (4 << 20)
    budget = max(4 << 20, min(32 << 20, budget))
    tn = min(512, max(8, budget // per_slice))
    # Only split further for megacore / pipelining when there is enough work that the
    # matmul M dimension stays >= 128 (>= 4 grid steps, i.e. >= 2 per v7x core).
    if n >= 4 * 128:
        per_step = ((-(-n // 4)) + 7) // 8 * 8
        tn = min(tn, max(128, per_step))
    tn = min(tn, n)
    return max(8, (tn // 8) * 8)


def dc_layer(mask, x_rec_r, x_rec_i, x_under_r, x_under_i):
    """mask, x_rec_*, x_under_*: float32 (B, C, H, W).
    Returns float32 (B, C, H, W) = |ifft2(ifftshift((1 - mask) * x_rec + x_under))|."""
    B, C, H, W = x_rec_r.shape
    hw = H * W
    n = B * C

    if 2 * hw > 2048:
        # TODO(synk): separable two-stage block-packed transform for large H, W.
        raise NotImplementedError("dc_layer fused-operator path requires H*W <= 1024")

    f32 = jnp.float32
    if mask.shape != x_rec_r.shape:
        mask = jnp.broadcast_to(mask, x_rec_r.shape)

    # metadata-only reshapes (contiguous (B,C,H,W) -> (B*C, H*W)); no packing / padding
    mask2d = mask.astype(f32).reshape(n, hw)
    xrr = x_rec_r.astype(f32).reshape(n, hw)
    xri = x_rec_i.astype(f32).reshape(n, hw)
    xur = x_under_r.astype(f32).reshape(n, hw)
    xui = x_under_i.astype(f32).reshape(n, hw)

    kmat = jnp.asarray(_ifftshift_ifft2_block_operator(H, W))   # (2*hw, 2*hw) f32
    k_bytes = (2 * hw) * (2 * hw) * 4

    vmem_cap = _vmem_capacity_bytes()

    # constant index_map -> single-buffer the operator (fallback: default 2 buffers)
    try:
        kmat_spec = pl.BlockSpec((2 * hw, 2 * hw), lambda i: (0, 0),
                                 pipeline_mode=pl.Buffered(1))
        k_bufs = 1
    except TypeError:
        kmat_spec = pl.BlockSpec((2 * hw, 2 * hw), lambda i: (0, 0))
        k_bufs = 2

    tn = _choose_tile(n, hw, vmem_cap, k_bufs * k_bytes)
    g = pl.cdiv(n, tn)

    slab_spec = pl.BlockSpec((tn, hw), lambda i: (i, 0))

    # explicit VMEM budget: double-buffered I/O blocks + operator + temporaries + headroom
    in_blk = 5 * tn * hw * 4
    out_blk = tn * hw * 4
    tmp_bytes = 2 * tn * (2 * hw) * 4
    vmem_need = 2 * (in_blk + out_blk) + k_bufs * k_bytes + tmp_bytes + (4 << 20)
    vmem_limit = int(min(max(vmem_need, 16 << 20), (vmem_cap * 3) // 4))

    out = pl.pallas_call(
        _dc_kernel,
        out_shape=jax.ShapeDtypeStruct((n, hw), f32),
        grid=(g,),
        in_specs=[slab_spec, slab_spec, slab_spec, slab_spec, slab_spec, kmat_spec],
        out_specs=pl.BlockSpec((tn, hw), lambda i: (i, 0)),
        compiler_params=pltpu.CompilerParams(
            dimension_semantics=("parallel",),
            vmem_limit_bytes=vmem_limit,
        ),
    )(mask2d, xrr, xri, xur, xui, kmat)

    return out.reshape(B, C, H, W)                  # metadata-only


if __name__ == "__main__":
    B, C, H, W = 2, 4, 16, 16
    key = jax.random.PRNGKey(0)
    k1, k2, k3, k4, k5 = jax.random.split(key, 5)

    # binary undersampling mask (real), complex k-space x_rec / x_under as re/im
    mask = (jax.random.uniform(k1, (B, C, H, W)) > 0.5).astype(jnp.float32)
    x_rec_r = jax.random.normal(k2, (B, C, H, W), dtype=jnp.float32)
    x_rec_i = jax.random.normal(k3, (B, C, H, W), dtype=jnp.float32)
    x_under_r = jax.random.normal(k4, (B, C, H, W), dtype=jnp.float32)
    x_under_i = jax.random.normal(k5, (B, C, H, W), dtype=jnp.float32)

    out = jax.jit(dc_layer)(mask, x_rec_r, x_rec_i, x_under_r, x_under_i)
    out = jax.block_until_ready(out)

    # reference check with jnp.fft (complex)
    x_rec_c = x_rec_r + 1j * x_rec_i
    x_under_c = x_under_r + 1j * x_under_i
    x_dc = (1.0 - mask) * x_rec_c + x_under_c
    ref = jnp.abs(jnp.fft.ifft2(jnp.fft.ifftshift(x_dc, axes=(-2, -1))))
    assert np.allclose(np.asarray(out), np.asarray(ref), atol=1e-4, rtol=1e-4)

    print("KERNEL_OK")
</pallas_src>

<mosaic_0001>
module attributes {stable_mosaic.version = 11 : i64} {
  func.func @_dc_kernel(%arg0: i32, %arg1: memref<8x256xf32, #tpu.memory_space<vmem>>, %arg2: memref<8x256xf32, #tpu.memory_space<vmem>>, %arg3: memref<8x256xf32, #tpu.memory_space<vmem>>, %arg4: memref<8x256xf32, #tpu.memory_space<vmem>>, %arg5: memref<8x256xf32, #tpu.memory_space<vmem>>, %arg6: memref<512x512xf32, #tpu.memory_space<vmem>>, %arg7: memref<8x256xf32, #tpu.memory_space<vmem>>) attributes {dimension_semantics = [#tpu.dimension_semantics<parallel>], iteration_bounds = array<i64: 1>, scalar_prefetch = 0 : i64, scratch_operands = 0 : i64, tpu.core_type = #tpu.core_type<tc>, window_params = [{transform_indices = @transform_0, window_bounds = array<i64: 8, 256>}, {transform_indices = @transform_1, window_bounds = array<i64: 8, 256>}, {transform_indices = @transform_2, window_bounds = array<i64: 8, 256>}, {transform_indices = @transform_3, window_bounds = array<i64: 8, 256>}, {transform_indices = @transform_4, window_bounds = array<i64: 8, 256>}, {pipeline_mode = #tpu.pipeline_mode<synchronous>, transform_indices = @transform_5, window_bounds = array<i64: 512, 512>}, {transform_indices = @transform_6, window_bounds = array<i64: 8, 256>}]} {
    %c0 = arith.constant 0 : index
    %c0_0 = arith.constant 0 : index
    %0 = vector.load %arg1[%c0, %c0_0] : memref<8x256xf32, #tpu.memory_space<vmem>>, vector<8x256xf32>
    %cst = arith.constant 1.000000e+00 : f32
    %1 = vector.broadcast %cst : f32 to vector<8x256xf32>
    %2 = arith.subf %1, %0 : vector<8x256xf32>
    %c0_1 = arith.constant 0 : index
    %c0_2 = arith.constant 0 : index
    %3 = vector.load %arg2[%c0_1, %c0_2] : memref<8x256xf32, #tpu.memory_space<vmem>>, vector<8x256xf32>
    %4 = arith.mulf %2, %3 : vector<8x256xf32>
    %c0_3 = arith.constant 0 : index
    %c0_4 = arith.constant 0 : index
    %5 = vector.load %arg4[%c0_3, %c0_4] : memref<8x256xf32, #tpu.memory_space<vmem>>, vector<8x256xf32>
    %6 = arith.addf %4, %5 : vector<8x256xf32>
    %c0_5 = arith.constant 0 : index
    %c0_6 = arith.constant 0 : index
    %7 = vector.load %arg3[%c0_5, %c0_6] : memref<8x256xf32, #tpu.memory_space<vmem>>, vector<8x256xf32>
    %8 = arith.mulf %2, %7 : vector<8x256xf32>
    %c0_7 = arith.constant 0 : index
    %c0_8 = arith.constant 0 : index
    %9 = vector.load %arg5[%c0_7, %c0_8] : memref<8x256xf32, #tpu.memory_space<vmem>>, vector<8x256xf32>
    %10 = arith.addf %8, %9 : vector<8x256xf32>
    %11 = tpu.concatenate %6, %10 in 1 : vector<8x256xf32>, vector<8x256xf32> -> vector<8x512xf32>
    %c0_9 = arith.constant 0 : index
    %c0_10 = arith.constant 0 : index
    %12 = vector.load %arg6[%c0_9, %c0_10] : memref<512x512xf32, #tpu.memory_space<vmem>>, vector<512x512xf32>
    %cst_11 = arith.constant dense<0.000000e+00> : vector<8x512xf32>
    %13 = tpu.matmul %11, %12, %cst_11 {dimension_numbers = #tpu.dot_dimension_numbers<[1], [0], [0], [1], [0, 0, 1, 1], [], []>} : vector<8x512xf32>, vector<512x512xf32>, vector<8x512xf32> -> vector<8x512xf32>
    %14 = vector.extract_strided_slice %13 {offsets = [0, 0], sizes = [8, 256], strides = [1, 1]} : vector<8x512xf32> to vector<8x256xf32>
    %15 = vector.extract_strided_slice %13 {offsets = [0, 256], sizes = [8, 256], strides = [1, 1]} : vector<8x512xf32> to vector<8x256xf32>
    %16 = arith.mulf %14, %14 : vector<8x256xf32>
    %17 = arith.mulf %15, %15 : vector<8x256xf32>
    %18 = arith.addf %16, %17 : vector<8x256xf32>
    %19 = math.sqrt %18 : vector<8x256xf32>
    %c0_12 = arith.constant 0 : index
    %c0_13 = arith.constant 0 : index
    %20 = vector.load %arg7[%c0_12, %c0_13] : memref<8x256xf32, #tpu.memory_space<vmem>>, vector<8x256xf32>
    tpu.vector_store %arg7[%c0_12, %c0_13], %19 {strides = array<i32>} : memref<8x256xf32, #tpu.memory_space<vmem>>, vector<8x256xf32>,
    return
  }
  func.func @transform_0(%arg0: i32) -> (i32, i32) {
    %c0_i32 = arith.constant 0 : i32
    %c0_i32_0 = arith.constant 0 : i32
    return %arg0, %c0_i32 : i32, i32
  }
  func.func @transform_1(%arg0: i32) -> (i32, i32) {
    %c0_i32 = arith.constant 0 : i32
    %c0_i32_0 = arith.constant 0 : i32
    return %arg0, %c0_i32 : i32, i32
  }
  func.func @transform_2(%arg0: i32) -> (i32, i32) {
    %c0_i32 = arith.constant 0 : i32
    %c0_i32_0 = arith.constant 0 : i32
    return %arg0, %c0_i32 : i32, i32
  }
  func.func @transform_3(%arg0: i32) -> (i32, i32) {
    %c0_i32 = arith.constant 0 : i32
    %c0_i32_0 = arith.constant 0 : i32
    return %arg0, %c0_i32 : i32, i32
  }
  func.func @transform_4(%arg0: i32) -> (i32, i32) {
    %c0_i32 = arith.constant 0 : i32
    %c0_i32_0 = arith.constant 0 : i32
    return %arg0, %c0_i32 : i32, i32
  }
  func.func @transform_5(%arg0: i32) -> (i32, i32) {
    %c0_i32 = arith.constant 0 : i32
    %c0_i32_0 = arith.constant 0 : i32
    %c0_i32_1 = arith.constant 0 : i32
    return %c0_i32, %c0_i32_0 : i32, i32
  }
  func.func @transform_6(%arg0: i32) -> (i32, i32) {
    %c0_i32 = arith.constant 0 : i32
    %c0_i32_0 = arith.constant 0 : i32
    return %arg0, %c0_i32 : i32, i32
  }
}

</mosaic_0001>

<llo_original>
// kernel: dc_layer.1
$region0: #{dc_layer.1}
  #allocation0 [shape = 'u32[]', space=smem, size = 0x4, offset = 0x4, fixed_abs, tag = 'smem constant byte address 0x4 - core index']
  #allocation1 [shape = 'u32[72,128]{1,0:T(1,128)}', space=vmem, size = 0x9000, scoped, tag = 'internal scratch']
  %s0 = inlined_call_operand.vmem [shape: f32[8,256], index: 0, kind: input, shape index: {}]
  %s1 = inlined_call_operand.vmem [shape: f32[8,256], index: 1, kind: input, shape index: {}]
  %s2 = inlined_call_operand.vmem [shape: f32[8,256], index: 2, kind: input, shape index: {}]
  %s3 = inlined_call_operand.vmem [shape: f32[8,256], index: 3, kind: input, shape index: {}]
  %s4 = inlined_call_operand.vmem [shape: f32[8,256], index: 4, kind: input, shape index: {}]
  %s5 = inlined_call_operand.hbm [shape: f32[512,512], index: 5, kind: input, shape index: {}]
  %s6 = inlined_call_operand.vmem [shape: f32[8,256], index: 6, kind: output, shape index: {}]
  %s7 = sld [smem:[#allocation0]]
  $region38: #{dc_layer.1} parent=0
    _
  %s9 = ssub.s32 1, %s7
  %s10 = scalar_select 0, %s9, %s7
  $region1: #{dc_layer.1} parent=0
    #allocation2 [shape = 'u8[1048576]{0}', space=vmem, size = 0x100000, scoped, tag = 'input window, operand 5, single buffered']
    #allocation3 [shape = 's32[1]{0}', space=sflag, size = 0x4, scoped, tag = 'scoped memory for dc_layer.1']
    %11 = vsyncpa [#allocation3], 0
    // Predicated region
    $region2: #{dc_layer.1} parent=1 // pred_check
      _
    $region3: #{dc_layer.1} parent=1 // pred_check_branch
      %13 = sbr.rel (0) target = $region5
    $region4: #{dc_layer.1} parent=1 // pred_region
      _
    $region5: #{dc_layer.1} parent=1 // pred_fallthru
      _
    // Predicated region
    $region6: #{dc_layer.1} parent=1 // pred_check
      _
    $region7: #{dc_layer.1} parent=1 // pred_check_branch
      %15 = sbr.rel (0) target = $region9
    $region8: #{dc_layer.1} parent=1 // pred_region
      _
    $region9: #{dc_layer.1} parent=1 // pred_fallthru
      _
    // Predicated region
    $region10: #{dc_layer.1} parent=1 // pred_check
      _
    $region11: #{dc_layer.1} parent=1 // pred_check_branch
      %17 = sbr.rel (0) target = $region13
    $region12: #{dc_layer.1} parent=1 // pred_region
      _
    $region13: #{dc_layer.1} parent=1 // pred_fallthru
      _
    // Predicated region
    $region14: #{dc_layer.1} parent=1 // pred_check
      _
    $region15: #{dc_layer.1} parent=1 // pred_check_branch
      %19 = sbr.rel (0) target = $region17
    $region16: #{dc_layer.1} parent=1 // pred_region
      _
    $region17: #{dc_layer.1} parent=1 // pred_fallthru
      _
    // Predicated region
    $region18: #{dc_layer.1} parent=1 // pred_check
      _
    $region19: #{dc_layer.1} parent=1 // pred_check_branch
      %21 = sbr.rel (0) target = $region21
    $region20: #{dc_layer.1} parent=1 // pred_region
      _
    $region21: #{dc_layer.1} parent=1 // pred_fallthru
      _
    // Predicated region
    $region22: #{dc_layer.1} parent=1 // pred_check
      _
    $region23: #{dc_layer.1} parent=1 // pred_check_branch
      %23 = sbr.rel (0) target = $region25
    $region24: #{dc_layer.1} parent=1 // pred_region
      %25 = vsyncadd [#allocation3], 0
      %s26 = sshll.u32 %s5, 4
      %s27 = int_to_ptr.hbm [resolvable:$true] %s26
      %s28 = sshll.u32 [#allocation2], 4
      %s29 = int_to_ptr.vmem [resolvable:$true] %s28
      %34 = dma.hbm_to_vmem [thread:$0]  %s27, 32768, %s29, [#allocation3], 512, 512, 32
    $region25: #{dc_layer.1} parent=1 // pred_fallthru
      _
    // Predicated region
    $region26: #{dc_layer.1} parent=1 // pred_check
      _
    $region27: #{dc_layer.1} parent=1 // pred_check_branch
      %36 = sbr.rel (0) target = $region29
    $region28: #{dc_layer.1} parent=1 // pred_region
      %38 = dma.done [#allocation3], 32768
    $region29: #{dc_layer.1} parent=1 // pred_fallthru
      _
    %v39 = vld [vmem:[%s0] sm:$0xff]
    %v40 = vld [vmem:[%s0 + $0x8] sm:$0xff]
    %v41 = vsub.f32 1.0, %v39
    %v42 = vsub.f32 1.0, %v40
    %v43 = vld [vmem:[%s1] sm:$0xff]
    %v44 = vld [vmem:[%s1 + $0x8] sm:$0xff]
    %v45 = vmul.f32 %v41, %v43
    %v46 = vmul.f32 %v42, %v44
    %v47 = vld [vmem:[%s3] sm:$0xff]
    %v48 = vld [vmem:[%s3 + $0x8] sm:$0xff]
    %v49 = vadd.f32 %v45, %v47
    %v50 = vadd.f32 %v46, %v48
    %v51 = vld [vmem:[%s2] sm:$0xff]
    %v52 = vld [vmem:[%s2 + $0x8] sm:$0xff]
    %v53 = vmul.f32 %v41, %v51
    %v54 = vmul.f32 %v42, %v52
    %v55 = vld [vmem:[%s4] sm:$0xff]
    %v56 = vld [vmem:[%s4 + $0x8] sm:$0xff]
    %v57 = vadd.f32 %v53, %v55
    %v58 = vadd.f32 %v54, %v56
    %v59 = vld [vmem:[#allocation2] sm:$0xff]
    %v60 = vld [vmem:[#allocation2 + $0x8] sm:$0xff]
    %v61 = vld [vmem:[#allocation2 + $0x10] sm:$0xff]
    %v62 = vld [vmem:[#allocation2 + $0x18] sm:$0xff]
    %v63 = vld [vmem:[#allocation2 + $0x20] sm:$0xff]
    %v64 = vld [vmem:[#allocation2 + $0x28] sm:$0xff]
    %v65 = vld [vmem:[#allocation2 + $0x30] sm:$0xff]
    %v66 = vld [vmem:[#allocation2 + $0x38] sm:$0xff]
    %v67 = vld [vmem:[#allocation2 + $0x40] sm:$0xff]
    %v68 = vld [vmem:[#allocation2 + $0x48] sm:$0xff]
    %v69 = vld [vmem:[#allocation2 + $0x50] sm:$0xff]
    %v70 = vld [vmem:[#allocation2 + $0x58] sm:$0xff]
    %v71 = vld [vmem:[#allocation2 + $0x60] sm:$0xff]
    %v72 = vld [vmem:[#allocation2 + $0x68] sm:$0xff]
    %v73 = vld [vmem:[#allocation2 + $0x70] sm:$0xff]
    %v74 = vld [vmem:[#allocation2 + $0x78] sm:$0xff]
    %v75 = vld [vmem:[#allocation2 + $0x80] sm:$0xff]
    %v76 = vld [vmem:[#allocation2 + $0x88] sm:$0xff]
    %v77 = vld [vmem:[#allocation2 + $0x90] sm:$0xff]
    %v78 = vld [vmem:[#allocation2 + $0x98] sm:$0xff]
    %v79 = vld [vmem:[#allocation2 + $0xa0] sm:$0xff]
    %v80 = vld [vmem:[#allocation2 + $0xa8] sm:$0xff]
    %v81 = vld [vmem:[#allocation2 + $0xb0] sm:$0xff]
    %v82 = vld [vmem:[#allocation2 + $0xb8] sm:$0xff]
    %v83 = vld [vmem:[#allocation2 + $0xc0] sm:$0xff]
    %v84 = vld [vmem:[#allocation2 + $0xc8] sm:$0xff]
    %v85 = vld [vmem:[#allocation2 + $0xd0] sm:$0xff]
    %v86 = vld [vmem:[#allocation2 + $0xd8] sm:$0xff]
    %v87 = vld [vmem:[#allocation2 + $0xe0] sm:$0xff]
    %v88 = vld [vmem:[#allocation2 + $0xe8] sm:$0xff]
    %v89 = vld [vmem:[#allocation2 + $0xf0] sm:$0xff]
    %v90 = vld [vmem:[#allocation2 + $0xf8] sm:$0xff]
    %v91 = vld [vmem:[#allocation2 + $0x100] sm:$0xff]
    %v92 = vld [vmem:[#allocation2 + $0x108] sm:$0xff]
    %v93 = vld [vmem:[#allocation2 + $0x110] sm:$0xff]
    %v94 = vld [vmem:[#allocation2 + $0x118] sm:$0xff]
    %v95 = vld [vmem:[#allocation2 + $0x120] sm:$0xff]
    %v96 = vld [vmem:[#allocation2 + $0x128] sm:$0xff]
    %v97 = vld [vmem:[#allocation2 + $0x130] sm:$0xff]
    %v98 = vld [vmem:[#allocation2 + $0x138] sm:$0xff]
    %v99 = vld [vmem:[#allocation2 + $0x140] sm:$0xff]
    %v100 = vld [vmem:[#allocation2 + $0x148] sm:$0xff]
    %v101 = vld [vmem:[#allocation2 + $0x150] sm:$0xff]
    %v102 = vld [vmem:[#allocation2 + $0x158] sm:$0xff]
    %v103 = vld [vmem:[#allocation2 + $0x160] sm:$0xff]
    %v104 = vld [vmem:[#allocation2 + $0x168] sm:$0xff]
    %v105 = vld [vmem:[#allocation2 + $0x170] sm:$0xff]
    %v106 = vld [vmem:[#allocation2 + $0x178] sm:$0xff]
    %v107 = vld [vmem:[#allocation2 + $0x180] sm:$0xff]
    %v108 = vld [vmem:[#allocation2 + $0x188] sm:$0xff]
    %v109 = vld [vmem:[#allocation2 + $0x190] sm:$0xff]
    %v110 = vld [vmem:[#allocation2 + $0x198] sm:$0xff]
    %v111 = vld [vmem:[#allocation2 + $0x1a0] sm:$0xff]
    %v112 = vld [vmem:[#allocation2 + $0x1a8] sm:$0xff]
    %v113 = vld [vmem:[#allocation2 + $0x1b0] sm:$0xff]
    %v114 = vld [vmem:[#allocation2 + $0x1b8] sm:$0xff]
    %v115 = vld [vmem:[#allocation2 + $0x1c0] sm:$0xff]
    %v116 = vld [vmem:[#allocation2 + $0x1c8] sm:$0xff]
    %v117 = vld [vmem:[#allocation2 + $0x1d0] sm:$0xff]
    %v118 = vld [vmem:[#allocation2 + $0x1d8] sm:$0xff]
    %v119 = vld [vmem:[#allocation2 + $0x1e0] sm:$0xff]
    %v120 = vld [vmem:[#allocation2 + $0x1e8] sm:$0xff]
    %v121 = vld [vmem:[#allocation2 + $0x1f0] sm:$0xff]
    %v122 = vld [vmem:[#allocation2 + $0x1f8] sm:$0xff]
    %v123 = vld [vmem:[#allocation2 + $0x200] sm:$0xff]
    %v124 = vld [vmem:[#allocation2 + $0x208] sm:$0xff]
    %v125 = vld [vmem:[#allocation2 + $0x210] sm:$0xff]
    %v126 = vld [vmem:[#allocation2 + $0x218] sm:$0xff]
    %v127 = vld [vmem:[#allocation2 + $0x220] sm:$0xff]
    %v128 = vld [vmem:[#allocation2 + $0x228] sm:$0xff]
    %v129 = vld [vmem:[#allocation2 + $0x230] sm:$0xff]
    %v130 = vld [vmem:[#allocation2 + $0x238] sm:$0xff]
    %v131 = vld [vmem:[#allocation2 + $0x240] sm:$0xff]
    %v132 = vld [vmem:[#allocation2 + $0x248] sm:$0xff]
    %v133 = vld [vmem:[#allocation2 + $0x250] sm:$0xff]
    %v134 = vld [vmem:[#allocation2 + $0x258] sm:$0xff]
    %v135 = vld [vmem:[#allocation2 + $0x260] sm:$0xff]
    %v136 = vld [vmem:[#allocation2 + $0x268] sm:$0xff]
    %v137 = vld [vmem:[#allocation2 + $0x270] sm:$0xff]
    %v138 = vld [vmem:[#allocation2 + $0x278] sm:$0xff]
    %v139 = vld [vmem:[#allocation2 + $0x280] sm:$0xff]
    %v140 = vld [vmem:[#allocation2 + $0x288] sm:$0xff]
    %v141 = vld [vmem:[#allocation2 + $0x290] sm:$0xff]
    %v142 = vld [vmem:[#allocation2 + $0x298] sm:$0xff]
    %v143 = vld [vmem:[#allocation2 + $0x2a0] sm:$0xff]
    %v144 = vld [vmem:[#allocation2 + $0x2a8] sm:$0xff]
    %v145 = vld [vmem:[#allocation2 + $0x2b0] sm:$0xff]
    %v146 = vld [vmem:[#allocation2 + $0x2b8] sm:$0xff]
    %v147 = vld [vmem:[#allocation2 + $0x2c0] sm:$0xff]
    %v148 = vld [vmem:[#allocation2 + $0x2c8] sm:$0xff]
    %v149 = vld [vmem:[#allocation2 + $0x2d0] sm:$0xff]
    %v150 = vld [vmem:[#allocation2 + $0x2d8] sm:$0xff]
    %v151 = vld [vmem:[#allocation2 + $0x2e0] sm:$0xff]
    %v152 = vld [vmem:[#allocation2 + $0x2e8] sm:$0xff]
    %v153 = vld [vmem:[#allocation2 + $0x2f0] sm:$0xff]
    %v154 = vld [vmem:[#allocation2 + $0x2f8] sm:$0xff]
    %v155 = vld [vmem:[#allocation2 + $0x300] sm:$0xff]
    %v156 = vld [vmem:[#allocation2 + $0x308] sm:$0xff]
    %v157 = vld [vmem:[#allocation2 + $0x310] sm:$0xff]
    %v158 = vld [vmem:[#allocation2 + $0x318] sm:$0xff]
    %v159 = vld [vmem:[#allocation2 + $0x320] sm:$0xff]
    %v160 = vld [vmem:[#allocation2 + $0x328] sm:$0xff]
    %v161 = vld [vmem:[#allocation2 + $0x330] sm:$0xff]
    %v162 = vld [vmem:[#allocation2 + $0x338] sm:$0xff]
    %v163 = vld [vmem:[#allocation2 + $0x340] sm:$0xff]
    %v164 = vld [vmem:[#allocation2 + $0x348] sm:$0xff]
    %v165 = vld [vmem:[#allocation2 + $0x350] sm:$0xff]
    %v166 = vld [vmem:[#allocation2 + $0x358] sm:$0xff]
    %v167 = vld [vmem:[#allocation2 + $0x360] sm:$0xff]
    %v168 = vld [vmem:[#allocation2 + $0x368] sm:$0xff]
    %v169 = vld [vmem:[#allocation2 + $0x370] sm:$0xff]
    %v170 = vld [vmem:[#allocation2 + $0x378] sm:$0xff]
    %v171 = vld [vmem:[#allocation2 + $0x380] sm:$0xff]
    %v172 = vld [vmem:[#allocation2 + $0x388] sm:$0xff]
    %v173 = vld [vmem:[#allocation2 + $0x390] sm:$0xff]
    %v174 = vld [vmem:[#allocation2 + $0x398] sm:$0xff]
    %v175 = vld [vmem:[#allocation2 + $0x3a0] sm:$0xff]
    %v176 = vld [vmem:[#allocation2 + $0x3a8] sm:$0xff]
    %v177 = vld [vmem:[#allocation2 + $0x3b0] sm:$0xff]
    %v178 = vld [vmem:[#allocation2 + $0x3b8] sm:$0xff]
    %v179 = vld [vmem:[#allocation2 + $0x3c0] sm:$0xff]
    %v180 = vld [vmem:[#allocation2 + $0x3c8] sm:$0xff]
    %v181 = vld [vmem:[#allocation2 + $0x3d0] sm:$0xff]
    %v182 = vld [vmem:[#allocation2 + $0x3d8] sm:$0xff]
    %v183 = vld [vmem:[#allocation2 + $0x3e0] sm:$0xff]
    %v184 = vld [vmem:[#allocation2 + $0x3e8] sm:$0xff]
    %v185 = vld [vmem:[#allocation2 + $0x3f0] sm:$0xff]
    %v186 = vld [vmem:[#allocation2 + $0x3f8] sm:$0xff]
    %v187 = vld [vmem:[#allocation2 + $0x400] sm:$0xff]
    %v188 = vld [vmem:[#allocation2 + $0x408] sm:$0xff]
    %v189 = vld [vmem:[#allocation2 + $0x410] sm:$0xff]
    %v190 = vld [vmem:[#allocation2 + $0x418] sm:$0xff]
    %v191 = vld [vmem:[#allocation2 + $0x420] sm:$0xff]
    %v192 = vld [vmem:[#allocation2 + $0x428] sm:$0xff]
    %v193 = vld [vmem:[#allocation2 + $0x430] sm:$0xff]
    %v194 = vld [vmem:[#allocation2 + $0x438] sm:$0xff]
    %v195 = vld [vmem:[#allocation2 + $0x440] sm:$0xff]
    %v196 = vld [vmem:[#allocation2 + $0x448] sm:$0xff]
    %v197 = vld [vmem:[#allocation2 + $0x450] sm:$0xff]
    %v198 = vld [vmem:[#allocation2 + $0x458] sm:$0xff]
    %v199 = vld [vmem:[#allocation2 + $0x460] sm:$0xff]
    %v200 = vld [vmem:[#allocation2 + $0x468] sm:$0xff]
    %v201 = vld [vmem:[#allocation2 + $0x470] sm:$0xff]
    %v202 = vld [vmem:[#allocation2 + $0x478] sm:$0xff]
    %v203 = vld [vmem:[#allocation2 + $0x480] sm:$0xff]
    %v204 = vld [vmem:[#allocation2 + $0x488] sm:$0xff]
    %v205 = vld [vmem:[#allocation2 + $0x490] sm:$0xff]
    %v206 = vld [vmem:[#allocation2 + $0x498] sm:$0xff]
    %v207 = vld [vmem:[#allocation2 + $0x4a0] sm:$0xff]
    %v208 = vld [vmem:[#allocation2 + $0x4a8] sm:$0xff]
    %v209 = vld [vmem:[#allocation2 + $0x4b0] sm:$0xff]
    %v210 = vld [vmem:[#allocation2 + $0x4b8] sm:$0xff]
    %v211 = vld [vmem:[#allocation2 + $0x4c0] sm:$0xff]
    %v212 = vld [vmem:[#allocation2 + $0x4c8] sm:$0xff]
    %v213 = vld [vmem:[#allocation2 + $0x4d0] sm:$0xff]
    %v214 = vld [vmem:[#allocation2 + $0x4d8] sm:$0xff]
    %v215 = vld [vmem:[#allocation2 + $0x4e0] sm:$0xff]
    %v216 = vld [vmem:[#allocation2 + $0x4e8] sm:$0xff]
    %v217 = vld [vmem:[#allocation2 + $0x4f0] sm:$0xff]
    %v218 = vld [vmem:[#allocation2 + $0x4f8] sm:$0xff]
    %v219 = vld [vmem:[#allocation2 + $0x500] sm:$0xff]
    %v220 = vld [vmem:[#allocation2 + $0x508] sm:$0xff]
    %v221 = vld [vmem:[#allocation2 + $0x510] sm:$0xff]
    %v222 = vld [vmem:[#allocation2 + $0x518] sm:$0xff]
    %v223 = vld [vmem:[#allocation2 + $0x520] sm:$0xff]
    %v224 = vld [vmem:[#allocation2 + $0x528] sm:$0xff]
    %v225 = vld [vmem:[#allocation2 + $0x530] sm:$0xff]
    %v226 = vld [vmem:[#allocation2 + $0x538] sm:$0xff]
    %v227 = vld [vmem:[#allocation2 + $0x540] sm:$0xff]
    %v228 = vld [vmem:[#allocation2 + $0x548] sm:$0xff]
    %v229 = vld [vmem:[#allocation2 + $0x550] sm:$0xff]
    %v230 = vld [vmem:[#allocation2 + $0x558] sm:$0xff]
    %v231 = vld [vmem:[#allocation2 + $0x560] sm:$0xff]
    %v232 = vld [vmem:[#allocation2 + $0x568] sm:$0xff]
    %v233 = vld [vmem:[#allocation2 + $0x570] sm:$0xff]
    %v234 = vld [vmem:[#allocation2 + $0x578] sm:$0xff]
    %v235 = vld [vmem:[#allocation2 + $0x580] sm:$0xff]
    %v236 = vld [vmem:[#allocation2 + $0x588] sm:$0xff]
    %v237 = vld [vmem:[#allocation2 + $0x590] sm:$0xff]
    %v238 = vld [vmem:[#allocation2 + $0x598] sm:$0xff]
    %v239 = vld [vmem:[#allocation2 + $0x5a0] sm:$0xff]
    %v240 = vld [vmem:[#allocation2 + $0x5a8] sm:$0xff]
    %v241 = vld [vmem:[#allocation2 + $0x5b0] sm:$0xff]
    %v242 = vld [vmem:[#allocation2 + $0x5b8] sm:$0xff]
    %v243 = vld [vmem:[#allocation2 + $0x5c0] sm:$0xff]
    %v244 = vld [vmem:[#allocation2 + $0x5c8] sm:$0xff]
    %v245 = vld [vmem:[#allocation2 + $0x5d0] sm:$0xff]
    %v246 = vld [vmem:[#allocation2 + $0x5d8] sm:$0xff]
    %v247 = vld [vmem:[#allocation2 + $0x5e0] sm:$0xff]
    %v248 = vld [vmem:[#allocation2 + $0x5e8] sm:$0xff]
    %v249 = vld [vmem:[#allocation2 + $0x5f0] sm:$0xff]
    %v250 = vld [vmem:[#allocation2 + $0x5f8] sm:$0xff]
    %v251 = vld [vmem:[#allocation2 + $0x600] sm:$0xff]
    %v252 = vld [vmem:[#allocation2 + $0x608] sm:$0xff]
    %v253 = vld [vmem:[#allocation2 + $0x610] sm:$0xff]
    %v254 = vld [vmem:[#allocation2 + $0x618] sm:$0xff]
    %v255 = vld [vmem:[#allocation2 + $0x620] sm:$0xff]
    %v256 = vld [vmem:[#allocation2 + $0x628] sm:$0xff]
    %v257 = vld [vmem:[#allocation2 + $0x630] sm:$0xff]
    %v258 = vld [vmem:[#allocation2 + $0x638] sm:$0xff]
    %v259 = vld [vmem:[#allocation2 + $0x640] sm:$0xff]
    %v260 = vld [vmem:[#allocation2 + $0x648] sm:$0xff]
    %v261 = vld [vmem:[#allocation2 + $0x650] sm:$0xff]
    %v262 = vld [vmem:[#allocation2 + $0x658] sm:$0xff]
    %v263 = vld [vmem:[#allocation2 + $0x660] sm:$0xff]
    %v264 = vld [vmem:[#allocation2 + $0x668] sm:$0xff]
    %v265 = vld [vmem:[#allocation2 + $0x670] sm:$0xff]
    %v266 = vld [vmem:[#allocation2 + $0x678] sm:$0xff]
    %v267 = vld [vmem:[#allocation2 + $0x680] sm:$0xff]
    %v268 = vld [vmem:[#allocation2 + $0x688] sm:$0xff]
    %v269 = vld [vmem:[#allocation2 + $0x690] sm:$0xff]
    %v270 = vld [vmem:[#allocation2 + $0x698] sm:$0xff]
    %v271 = vld [vmem:[#allocation2 + $0x6a0] sm:$0xff]
    %v272 = vld [vmem:[#allocation2 + $0x6a8] sm:$0xff]
    %v273 = vld [vmem:[#allocation2 + $0x6b0] sm:$0xff]
    %v274 = vld [vmem:[#allocation2 + $0x6b8] sm:$0xff]
    %v275 = vld [vmem:[#allocation2 + $0x6c0] sm:$0xff]
    %v276 = vld [vmem:[#allocation2 + $0x6c8] sm:$0xff]
    %v277 = vld [vmem:[#allocation2 + $0x6d0] sm:$0xff]
    %v278 = vld [vmem:[#allocation2 + $0x6d8] sm:$0xff]
    %v279 = vld [vmem:[#allocation2 + $0x6e0] sm:$0xff]
    %v280 = vld [vmem:[#allocation2 + $0x6e8] sm:$0xff]
    %v281 = vld [vmem:[#allocation2 + $0x6f0] sm:$0xff]
    %v282 = vld [vmem:[#allocation2 + $0x6f8] sm:$0xff]
    %v283 = vld [vmem:[#allocation2 + $0x700] sm:$0xff]
    %v284 = vld [vmem:[#allocation2 + $0x708] sm:$0xff]
    %v285 = vld [vmem:[#allocation2 + $0x710] sm:$0xff]
    %v286 = vld [vmem:[#allocation2 + $0x718] sm:$0xff]
    %v287 = vld [vmem:[#allocation2 + $0x720] sm:$0xff]
    %v288 = vld [vmem:[#allocation2 + $0x728] sm:$0xff]
    %v289 = vld [vmem:[#allocation2 + $0x730] sm:$0xff]
    %v290 = vld [vmem:[#allocation2 + $0x738] sm:$0xff]
    %v291 = vld [vmem:[#allocation2 + $0x740] sm:$0xff]
    %v292 = vld [vmem:[#allocation2 + $0x748] sm:$0xff]
    %v293 = vld [vmem:[#allocation2 + $0x750] sm:$0xff]
    %v294 = vld [vmem:[#allocation2 + $0x758] sm:$0xff]
    %v295 = vld [vmem:[#allocation2 + $0x760] sm:$0xff]
    %v296 = vld [vmem:[#allocation2 + $0x768] sm:$0xff]
    %v297 = vld [vmem:[#allocation2 + $0x770] sm:$0xff]
    %v298 = vld [vmem:[#allocation2 + $0x778] sm:$0xff]
    %v299 = vld [vmem:[#allocation2 + $0x780] sm:$0xff]
    %v300 = vld [vmem:[#allocation2 + $0x788] sm:$0xff]
    %v301 = vld [vmem:[#allocation2 + $0x790] sm:$0xff]
    %v302 = vld [vmem:[#allocation2 + $0x798] sm:$0xff]
    %v303 = vld [vmem:[#allocation2 + $0x7a0] sm:$0xff]
    %v304 = vld [vmem:[#allocation2 + $0x7a8] sm:$0xff]
    %v305 = vld [vmem:[#allocation2 + $0x7b0] sm:$0xff]
    %v306 = vld [vmem:[#allocation2 + $0x7b8] sm:$0xff]
    %v307 = vld [vmem:[#allocation2 + $0x7c0] sm:$0xff]
    %v308 = vld [vmem:[#allocation2 + $0x7c8] sm:$0xff]
    %v309 = vld [vmem:[#allocation2 + $0x7d0] sm:$0xff]
    %v310 = vld [vmem:[#allocation2 + $0x7d8] sm:$0xff]
    %v311 = vld [vmem:[#allocation2 + $0x7e0] sm:$0xff]
    %v312 = vld [vmem:[#allocation2 + $0x7e8] sm:$0xff]
    %v313 = vld [vmem:[#allocation2 + $0x7f0] sm:$0xff]
    %v314 = vld [vmem:[#allocation2 + $0x7f8] sm:$0xff]
    %315 = vmatpush.msra.mxu0 %v119
    %316 = vmatpush.msra.mxu0 %v115
    %317 = vmatpush.msra.mxu0 %v111
    %318 = vmatpush.msra.mxu0 %v107
    %319 = vmatpush.msra.mxu0 %v103
    %320 = vmatpush.msra.mxu0 %v99
    %321 = vmatpush.msra.mxu0 %v95
    %322 = vmatpush.msra.mxu0 %v91
    %323 = vmatpush.msra.mxu0 %v87
    %324 = vmatpush.msra.mxu0 %v83
    %325 = vmatpush.msra.mxu0 %v79
    %326 = vmatpush.msra.mxu0 %v75
    %327 = vmatpush.msra.mxu0 %v71
    %328 = vmatpush.msra.mxu0 %v67
    %329 = vmatpush.msra.mxu0 %v63
    %330 = vmatpush.msra.mxu0 %v59
    %331 = vmatmul.f32.gmra.mxu0 %v49
    %v332 = vpop.f32.mrf.mxu0
    %v333 = vadd.f32 0.0, %v332
    %334 = vdwg.mxu0
    %335 = vmatpush.msra.mxu0 %v183
    %336 = vmatpush.msra.mxu0 %v179
    %337 = vmatpush.msra.mxu0 %v175
    %338 = vmatpush.msra.mxu0 %v171
    %339 = vmatpush.msra.mxu0 %v167
    %340 = vmatpush.msra.mxu0 %v163
    %341 = vmatpush.msra.mxu0 %v159
    %342 = vmatpush.msra.mxu0 %v155
    %343 = vmatpush.msra.mxu0 %v151
    %344 = vmatpush.msra.mxu0 %v147
    %345 = vmatpush.msra.mxu0 %v143
    %346 = vmatpush.msra.mxu0 %v139
    %347 = vmatpush.msra.mxu0 %v135
    %348 = vmatpush.msra.mxu0 %v131
    %349 = vmatpush.msra.mxu0 %v127
    %350 = vmatpush.msra.mxu0 %v123
    %351 = vmatmul.f32.gmra.mxu0 %v50
    %v352 = vpop.f32.mrf.mxu0
    %v353 = vadd.f32 %v333, %v352
    %354 = vdwg.mxu0
    %355 = vmatpush.msra.mxu0 %v247
    %356 = vmatpush.msra.mxu0 %v243
    %357 = vmatpush.msra.mxu0 %v239
    %358 = vmatpush.msra.mxu0 %v235
    %359 = vmatpush.msra.mxu0 %v231
    %360 = vmatpush.msra.mxu0 %v227
    %361 = vmatpush.msra.mxu0 %v223
    %362 = vmatpush.msra.mxu0 %v219
    %363 = vmatpush.msra.mxu0 %v215
    %364 = vmatpush.msra.mxu0 %v211
    %365 = vmatpush.msra.mxu0 %v207
    %366 = vmatpush.msra.mxu0 %v203
    %367 = vmatpush.msra.mxu0 %v199
    %368 = vmatpush.msra.mxu0 %v195
    %369 = vmatpush.msra.mxu0 %v191
    %370 = vmatpush.msra.mxu0 %v187
    %371 = vmatmul.f32.gmra.mxu0 %v57
    %v372 = vpop.f32.mrf.mxu0
    %v373 = vadd.f32 %v353, %v372
    %374 = vdwg.mxu0
    %375 = vmatpush.msra.mxu0 %v311
    %376 = vmatpush.msra.mxu0 %v307
    %377 = vmatpush.msra.mxu0 %v303
    %378 = vmatpush.msra.mxu0 %v299
    %379 = vmatpush.msra.mxu0 %v295
    %380 = vmatpush.msra.mxu0 %v291
    %381 = vmatpush.msra.mxu0 %v287
    %382 = vmatpush.msra.mxu0 %v283
    %383 = vmatpush.msra.mxu0 %v279
    %384 = vmatpush.msra.mxu0 %v275
    %385 = vmatpush.msra.mxu0 %v271
    %386 = vmatpush.msra.mxu0 %v267
    %387 = vmatpush.msra.mxu0 %v263
    %388 = vmatpush.msra.mxu0 %v259
    %389 = vmatpush.msra.mxu0 %v255
    %390 = vmatpush.msra.mxu0 %v251
    %391 = vmatmul.f32.gmra.mxu0 %v58
    %v392 = vpop.f32.mrf.mxu0
    %v393 = vadd.f32 %v373, %v392
    %394 = vdwg.mxu0
    %395 = vmatpush.msra.mxu0 %v120
    %396 = vmatpush.msra.mxu0 %v116
    %397 = vmatpush.msra.mxu0 %v112
    %398 = vmatpush.msra.mxu0 %v108
    %399 = vmatpush.msra.mxu0 %v104
    %400 = vmatpush.msra.mxu0 %v100
    %401 = vmatpush.msra.mxu0 %v96
    %402 = vmatpush.msra.mxu0 %v92
    %403 = vmatpush.msra.mxu0 %v88
    %404 = vmatpush.msra.mxu0 %v84
    %405 = vmatpush.msra.mxu0 %v80
    %406 = vmatpush.msra.mxu0 %v76
    %407 = vmatpush.msra.mxu0 %v72
    %408 = vmatpush.msra.mxu0 %v68
    %409 = vmatpush.msra.mxu0 %v64
    %410 = vmatpush.msra.mxu0 %v60
    %411 = vmatmul.f32.gmra.mxu0 %v49
    %v412 = vpop.f32.mrf.mxu0
    %v413 = vadd.f32 0.0, %v412
    %414 = vdwg.mxu0
    %415 = vmatpush.msra.mxu0 %v184
    %416 = vmatpush.msra.mxu0 %v180
    %417 = vmatpush.msra.mxu0 %v176
    %418 = vmatpush.msra.mxu0 %v172
    %419 = vmatpush.msra.mxu0 %v168
    %420 = vmatpush.msra.mxu0 %v164
    %421 = vmatpush.msra.mxu0 %v160
    %422 = vmatpush.msra.mxu0 %v156
    %423 = vmatpush.msra.mxu0 %v152
    %424 = vmatpush.msra.mxu0 %v148
    %425 = vmatpush.msra.mxu0 %v144
    %426 = vmatpush.msra.mxu0 %v140
    %427 = vmatpush.msra.mxu0 %v136
    %428 = vmatpush.msra.mxu0 %v132
    %429 = vmatpush.msra.mxu0 %v128
    %430 = vmatpush.msra.mxu0 %v124
    %431 = vmatmul.f32.gmra.mxu0 %v50
    %v432 = vpop.f32.mrf.mxu0
    %v433 = vadd.f32 %v413, %v432
    %434 = vdwg.mxu0
    %435 = vmatpush.msra.mxu0 %v248
    %436 = vmatpush.msra.mxu0 %v244
    %437 = vmatpush.msra.mxu0 %v240
    %438 = vmatpush.msra.mxu0 %v236
    %439 = vmatpush.msra.mxu0 %v232
    %440 = vmatpush.msra.mxu0 %v228
    %441 = vmatpush.msra.mxu0 %v224
    %442 = vmatpush.msra.mxu0 %v220
    %443 = vmatpush.msra.mxu0 %v216
    %444 = vmatpush.msra.mxu0 %v212
    %445 = vmatpush.msra.mxu0 %v208
    %446 = vmatpush.msra.mxu0 %v204
    %447 = vmatpush.msra.mxu0 %v200
    %448 = vmatpush.msra.mxu0 %v196
    %449 = vmatpush.msra.mxu0 %v192
    %450 = vmatpush.msra.mxu0 %v188
    %451 = vmatmul.f32.gmra.mxu0 %v57
    %v452 = vpop.f32.mrf.mxu0
    %v453 = vadd.f32 %v433, %v452
    %454 = vdwg.mxu0
    %455 = vmatpush.msra.mxu0 %v312
    %456 = vmatpush.msra.mxu0 %v308
    %457 = vmatpush.msra.mxu0 %v304
    %458 = vmatpush.msra.mxu0 %v300
    %459 = vmatpush.msra.mxu0 %v296
    %460 = vmatpush.msra.mxu0 %v292
    %461 = vmatpush.msra.mxu0 %v288
    %462 = vmatpush.msra.mxu0 %v284
    %463 = vmatpush.msra.mxu0 %v280
    %464 = vmatpush.msra.mxu0 %v276
    %465 = vmatpush.msra.mxu0 %v272
    %466 = vmatpush.msra.mxu0 %v268
    %467 = vmatpush.msra.mxu0 %v264
    %468 = vmatpush.msra.mxu0 %v260
    %469 = vmatpush.msra.mxu0 %v256
    %470 = vmatpush.msra.mxu0 %v252
    %471 = vmatmul.f32.gmra.mxu0 %v58
    %v472 = vpop.f32.mrf.mxu0
    %v473 = vadd.f32 %v453, %v472
    %474 = vdwg.mxu0
    %475 = vmatpush.msra.mxu0 %v121
    %476 = vmatpush.msra.mxu0 %v117
    %477 = vmatpush.msra.mxu0 %v113
    %478 = vmatpush.msra.mxu0 %v109
    %479 = vmatpush.msra.mxu0 %v105
    %480 = vmatpush.msra.mxu0 %v101
    %481 = vmatpush.msra.mxu0 %v97
    %482 = vmatpush.msra.mxu0 %v93
    %483 = vmatpush.msra.mxu0 %v89
    %484 = vmatpush.msra.mxu0 %v85
    %485 = vmatpush.msra.mxu0 %v81
    %486 = vmatpush.msra.mxu0 %v77
    %487 = vmatpush.msra.mxu0 %v73
    %488 = vmatpush.msra.mxu0 %v69
    %489 = vmatpush.msra.mxu0 %v65
    %490 = vmatpush.msra.mxu0 %v61
    %491 = vmatmul.f32.gmra.mxu0 %v49
    %v492 = vpop.f32.mrf.mxu0
    %v493 = vadd.f32 0.0, %v492
    %494 = vdwg.mxu0
    %495 = vmatpush.msra.mxu0 %v185
    %496 = vmatpush.msra.mxu0 %v181
    %497 = vmatpush.msra.mxu0 %v177
    %498 = vmatpush.msra.mxu0 %v173
    %499 = vmatpush.msra.mxu0 %v169
    %500 = vmatpush.msra.mxu0 %v165
    %501 = vmatpush.msra.mxu0 %v161
    %502 = vmatpush.msra.mxu0 %v157
    %503 = vmatpush.msra.mxu0 %v153
    %504 = vmatpush.msra.mxu0 %v149
    %505 = vmatpush.msra.mxu0 %v145
    %506 = vmatpush.msra.mxu0 %v141
    %507 = vmatpush.msra.mxu0 %v137
    %508 = vmatpush.msra.mxu0 %v133
    %509 = vmatpush.msra.mxu0 %v129
    %510 = vmatpush.msra.mxu0 %v125
    %511 = vmatmul.f32.gmra.mxu0 %v50
    %v512 = vpop.f32.mrf.mxu0
    %v513 = vadd.f32 %v493, %v512
    %514 = vdwg.mxu0
    %515 = vmatpush.msra.mxu0 %v249
    %516 = vmatpush.msra.mxu0 %v245
    %517 = vmatpush.msra.mxu0 %v241
    %518 = vmatpush.msra.mxu0 %v237
    %519 = vmatpush.msra.mxu0 %v233
    %520 = vmatpush.msra.mxu0 %v229
    %521 = vmatpush.msra.mxu0 %v225
    %522 = vmatpush.msra.mxu0 %v221
    %523 = vmatpush.msra.mxu0 %v217
    %524 = vmatpush.msra.mxu0 %v213
    %525 = vmatpush.msra.mxu0 %v209
    %526 = vmatpush.msra.mxu0 %v205
    %527 = vmatpush.msra.mxu0 %v201
    %528 = vmatpush.msra.mxu0 %v197
    %529 = vmatpush.msra.mxu0 %v193
    %530 = vmatpush.msra.mxu0 %v189
    %531 = vmatmul.f32.gmra.mxu0 %v57
    %v532 = vpop.f32.mrf.mxu0
    %v533 = vadd.f32 %v513, %v532
    %534 = vdwg.mxu0
    %535 = vmatpush.msra.mxu0 %v313
    %536 = vmatpush.msra.mxu0 %v309
    %537 = vmatpush.msra.mxu0 %v305
    %538 = vmatpush.msra.mxu0 %v301
    %539 = vmatpush.msra.mxu0 %v297
    %540 = vmatpush.msra.mxu0 %v293
    %541 = vmatpush.msra.mxu0 %v289
    %542 = vmatpush.msra.mxu0 %v285
    %543 = vmatpush.msra.mxu0 %v281
    %544 = vmatpush.msra.mxu0 %v277
    %545 = vmatpush.msra.mxu0 %v273
    %546 = vmatpush.msra.mxu0 %v269
    %547 = vmatpush.msra.mxu0 %v265
    %548 = vmatpush.msra.mxu0 %v261
    %549 = vmatpush.msra.mxu0 %v257
    %550 = vmatpush.msra.mxu0 %v253
    %551 = vmatmul.f32.gmra.mxu0 %v58
    %v552 = vpop.f32.mrf.mxu0
    %v553 = vadd.f32 %v533, %v552
    %554 = vdwg.mxu0
    %555 = vmatpush.msra.mxu0 %v122
    %556 = vmatpush.msra.mxu0 %v118
    %557 = vmatpush.msra.mxu0 %v114
    %558 = vmatpush.msra.mxu0 %v110
    %559 = vmatpush.msra.mxu0 %v106
    %560 = vmatpush.msra.mxu0 %v102
    %561 = vmatpush.msra.mxu0 %v98
    %562 = vmatpush.msra.mxu0 %v94
    %563 = vmatpush.msra.mxu0 %v90
    %564 = vmatpush.msra.mxu0 %v86
    %565 = vmatpush.msra.mxu0 %v82
    %566 = vmatpush.msra.mxu0 %v78
    %567 = vmatpush.msra.mxu0 %v74
    %568 = vmatpush.msra.mxu0 %v70
    %569 = vmatpush.msra.mxu0 %v66
    %570 = vmatpush.msra.mxu0 %v62
    %571 = vmatmul.f32.gmra.mxu0 %v49
    %v572 = vpop.f32.mrf.mxu0
    %v573 = vadd.f32 0.0, %v572
    %574 = vdwg.mxu0
    %575 = vmatpush.msra.mxu0 %v186
    %576 = vmatpush.msra.mxu0 %v182
    %577 = vmatpush.msra.mxu0 %v178
    %578 = vmatpush.msra.mxu0 %v174
    %579 = vmatpush.msra.mxu0 %v170
    %580 = vmatpush.msra.mxu0 %v166
    %581 = vmatpush.msra.mxu0 %v162
    %582 = vmatpush.msra.mxu0 %v158
    %583 = vmatpush.msra.mxu0 %v154
    %584 = vmatpush.msra.mxu0 %v150
    %585 = vmatpush.msra.mxu0 %v146
    %586 = vmatpush.msra.mxu0 %v142
    %587 = vmatpush.msra.mxu0 %v138
    %588 = vmatpush.msra.mxu0 %v134
    %589 = vmatpush.msra.mxu0 %v130
    %590 = vmatpush.msra.mxu0 %v126
    %591 = vmatmul.f32.gmra.mxu0 %v50
    %v592 = vpop.f32.mrf.mxu0
    %v593 = vadd.f32 %v573, %v592
    %594 = vdwg.mxu0
    %595 = vmatpush.msra.mxu0 %v250
    %596 = vmatpush.msra.mxu0 %v246
    %597 = vmatpush.msra.mxu0 %v242
    %598 = vmatpush.msra.mxu0 %v238
    %599 = vmatpush.msra.mxu0 %v234
    %600 = vmatpush.msra.mxu0 %v230
    %601 = vmatpush.msra.mxu0 %v226
    %602 = vmatpush.msra.mxu0 %v222
    %603 = vmatpush.msra.mxu0 %v218
    %604 = vmatpush.msra.mxu0 %v214
    %605 = vmatpush.msra.mxu0 %v210
    %606 = vmatpush.msra.mxu0 %v206
    %607 = vmatpush.msra.mxu0 %v202
    %608 = vmatpush.msra.mxu0 %v198
    %609 = vmatpush.msra.mxu0 %v194
    %610 = vmatpush.msra.mxu0 %v190
    %611 = vmatmul.f32.gmra.mxu0 %v57
    %v612 = vpop.f32.mrf.mxu0
    %v613 = vadd.f32 %v593, %v612
    %614 = vdwg.mxu0
    %615 = vmatpush.msra.mxu0 %v314
    %616 = vmatpush.msra.mxu0 %v310
    %617 = vmatpush.msra.mxu0 %v306
    %618 = vmatpush.msra.mxu0 %v302
    %619 = vmatpush.msra.mxu0 %v298
    %620 = vmatpush.msra.mxu0 %v294
    %621 = vmatpush.msra.mxu0 %v290
    %622 = vmatpush.msra.mxu0 %v286
    %623 = vmatpush.msra.mxu0 %v282
    %624 = vmatpush.msra.mxu0 %v278
    %625 = vmatpush.msra.mxu0 %v274
    %626 = vmatpush.msra.mxu0 %v270
    %627 = vmatpush.msra.mxu0 %v266
    %628 = vmatpush.msra.mxu0 %v262
    %629 = vmatpush.msra.mxu0 %v258
    %630 = vmatpush.msra.mxu0 %v254
    %631 = vmatmul.f32.gmra.mxu0 %v58
    %v632 = vpop.f32.mrf.mxu0
    %v633 = vadd.f32 %v613, %v632
    %634 = vdwg.mxu0
    %v635 = vmul.f32 %v393, %v393
    %v636 = vmul.f32 %v473, %v473
    %v637 = vmul.f32 %v553, %v553
    %v638 = vmul.f32 %v633, %v633
    %v639 = vadd.f32 %v635, %v637
    %v640 = vadd.f32 %v636, %v638
    %v641 = vrsqrt.pop %v639
    %v642 = vmul.f32 %v641, %v639
    %v643 = vmul.f32 %v642, %v641
    %v644 = vmul.f32 0.5, %v643
    %v645 = vsub.f32 1.5, %v644
    %v646 = vmul.f32 %v641, %v645
    %v647 = vmul.f32 %v639, %v646
    %vm648 = vcmp.eq.f32.partialorder %v639, inf
    %v649 = vsel %vm648, %v639, %v647
    %vm650 = vcmp.eq.f32.partialorder %v639, 0.0
    %v651 = vand.u32 %v639, 2147483648
    %v652 = vsel %vm650, %v651, %v649
    %v653 = vrsqrt.pop %v640
    %v654 = vmul.f32 %v653, %v640
    %v655 = vmul.f32 %v654, %v653
    %v656 = vmul.f32 0.5, %v655
    %v657 = vsub.f32 1.5, %v656
    %v658 = vmul.f32 %v653, %v657
    %v659 = vmul.f32 %v640, %v658
    %vm660 = vcmp.eq.f32.partialorder %v640, inf
    %v661 = vsel %vm660, %v640, %v659
    %vm662 = vcmp.eq.f32.partialorder %v640, 0.0
    %v663 = vand.u32 %v640, 2147483648
    %v664 = vsel %vm662, %v663, %v661
    %665 = vst [vmem:[%s6] sm:$0xff] %v652
    %666 = vst [vmem:[%s6 + $0x8] sm:$0xff] %v664
    // Predicated region
    $region30: #{dc_layer.1} parent=1 // pred_check
      _
    $region31: #{dc_layer.1} parent=1 // pred_check_branch
      %668 = sbr.rel (0) target = $region33
    $region32: #{dc_layer.1} parent=1 // pred_region
      _
    $region33: #{dc_layer.1} parent=1 // pred_fallthru
      _
    // Predicated region
    $region34: #{dc_layer.1} parent=1 // pred_check
      _
    $region35: #{dc_layer.1} parent=1 // pred_check_branch
      %670 = sbr.rel (0) target = $region37
    $region36: #{dc_layer.1} parent=1 // pred_region
      _
    $region37: #{dc_layer.1} parent=1 // pred_fallthru
      _
    %671 = vsyncpa [#allocation3], 1

</llo_original>
